<compile_context>
chip_gen: v6e
topology: v6e:2x2x1
jax: 0.10.0
libtpu: 0.0.40
codegen_flags: <defaults>
</compile_context>

<pallas_src>
import jax
import jax.numpy as jnp
from jax.experimental import pallas as pl
from jax.experimental.pallas import tpu as pltpu


def mlp_kernel(x_ref, w1_ref, b1_ref, w2_ref, b2_ref, w3_ref, b3_ref, o_ref):
    x = x_ref[...]  # (tile, 2) f32

    # Layer 1 on the VPU: K=2 would waste >98% of an MXU pass, so do two
    # broadcast FMAs instead of jnp.dot.
    h1 = x[:, 0:1] * w1_ref[0:1, :] + x[:, 1:2] * w1_ref[1:2, :] + b1_ref[...]
    h1 = jnp.maximum(h1, 0.0)  # (tile, 128) f32

    # Layer 2 on the MXU: bf16 inputs, f32 accumulation.
    h2 = jnp.dot(h1.astype(jnp.bfloat16), w2_ref[...],
                 preferred_element_type=jnp.float32)
    h2 = jnp.maximum(h2 + b2_ref[...], 0.0)  # (tile, 128) f32

    # Output layer on the MXU (pipelines behind layer 2; f32 accumulate).
    out = jnp.dot(h2, w3_ref[...], preferred_element_type=jnp.float32)
    o_ref[...] = (out + b3_ref[0, 0]).astype(o_ref.dtype)
    # TODO(synk): for very large batches, present the (N,1) output as a
    # lane-dense (N//128, 128) slab to avoid masked vst.msk stores.


def _round_up(x, m):
    return (x + m - 1) // m * m


def mlp_forward(x, w1, b1, w2, b2, w3, b3, *, tile_n=512):
    n, d_in = x.shape
    d_h = w1.shape[1]

    # Pick a batch tile (multiple of 8) and pad the batch to a multiple of it.
    tile = min(tile_n, _round_up(n, 8))
    n_pad = _round_up(n, tile)
    if n_pad != n:
        x = jnp.pad(x, ((0, n_pad - n), (0, 0)))
    grid = (n_pad // tile,)

    # Layer-2 weight in bf16 (halves resident-weight bytes, doubles MXU rate).
    w2_bf16 = w2.astype(jnp.bfloat16)

    flops = 2 * n_pad * (d_in * d_h + d_h * d_h + d_h)
    bytes_accessed = (x.size * 4 + w1.size * 4 + b1.size * 4
                      + w2_bf16.size * 2 + b2.size * 4 + w3.size * 4
                      + b3.size * 4 + n_pad * 4)

    # Resident (non-tiled) arrays: full-array block, constant index map.
    resident = lambda a: pl.BlockSpec(a.shape, lambda i: (0,) * a.ndim)

    out = pl.pallas_call(
        mlp_kernel,
        out_shape=jax.ShapeDtypeStruct((n_pad, 1), jnp.float32),
        grid=grid,
        in_specs=[
            pl.BlockSpec((tile, d_in), lambda i: (i, 0)),          # x (tiled)
            resident(w1), resident(b1),
            resident(w2_bf16), resident(b2),
            resident(w3),
            pl.BlockSpec(memory_space=pltpu.MemorySpace.SMEM),     # b3 scalar
        ],
        out_specs=pl.BlockSpec((tile, 1), lambda i: (i, 0)),
        compiler_params=pltpu.CompilerParams(
            dimension_semantics=("parallel",)),
        cost_estimate=pl.CostEstimate(
            flops=flops, transcendentals=0, bytes_accessed=bytes_accessed),
    )(x, w1, b1, w2_bf16, b2, w3, b3)
    return out[:n]


def init_linear(key, fan_in, fan_out):
    # Mimic PyTorch nn.Linear default init: U(-1/sqrt(fan_in), 1/sqrt(fan_in)).
    kw, kb = jax.random.split(key)
    bound = 1.0 / jnp.sqrt(jnp.float32(fan_in))
    # Stored as [in, out] (transposed relative to PyTorch's [out, in]).
    w = jax.random.uniform(kw, (fan_in, fan_out), jnp.float32, -bound, bound)
    b = jax.random.uniform(kb, (1, fan_out), jnp.float32, -bound, bound)
    return w, b


if __name__ == "__main__":
    key = jax.random.PRNGKey(0)
    kx, k1, k2, k3 = jax.random.split(key, 4)

    # Non-multiple-of-tile batch to exercise the padded/tiled grid path.
    batch = 200
    x = jax.random.normal(kx, (batch, 2), jnp.float32)

    w1, b1 = init_linear(k1, 2, 128)
    w2, b2 = init_linear(k2, 128, 128)
    w3, b3 = init_linear(k3, 128, 1)

    y = mlp_forward(x, w1, b1, w2, b2, w3, b3, tile_n=128)
    jax.block_until_ready(y)
    assert y.shape == (batch, 1)

    # Reference in plain JAX (same math as the PyTorch forward, pure f32).
    ref = jnp.maximum(x @ w1 + b1, 0.0)
    ref = jnp.maximum(ref @ w2 + b2, 0.0)
    ref = ref @ w3 + b3
    # Layer 2 runs with bf16 inputs (f32 accumulation) in the kernel, so allow
    # bf16-input rounding error vs. the full-f32 reference.
    assert jnp.allclose(y, ref, atol=2e-2, rtol=2e-2), (
        float(jnp.max(jnp.abs(y - ref))))

    print("KERNEL_OK")
</pallas_src>

<mosaic_0001>
module attributes {stable_mosaic.version = 11 : i64} {
  func.func @mlp_kernel(%arg0: i32, %arg1: memref<128x2xf32, #tpu.memory_space<vmem>>, %arg2: memref<2x128xf32, #tpu.memory_space<vmem>>, %arg3: memref<1x128xf32, #tpu.memory_space<vmem>>, %arg4: memref<128x128xbf16, #tpu.memory_space<vmem>>, %arg5: memref<1x128xf32, #tpu.memory_space<vmem>>, %arg6: memref<128x1xf32, #tpu.memory_space<vmem>>, %arg7: memref<1x1xf32, #tpu.memory_space<smem>>, %arg8: memref<128x1xf32, #tpu.memory_space<vmem>>) attributes {dimension_semantics = [#tpu.dimension_semantics<parallel>], iteration_bounds = array<i64: 2>, scalar_prefetch = 0 : i64, scratch_operands = 0 : i64, tpu.core_type = #tpu.core_type<tc>, window_params = [{transform_indices = @transform_0, window_bounds = array<i64: 128, 2>}, {pipeline_mode = #tpu.pipeline_mode<synchronous>, transform_indices = @transform_1, window_bounds = array<i64: 2, 128>}, {pipeline_mode = #tpu.pipeline_mode<synchronous>, transform_indices = @transform_2, window_bounds = array<i64: 1, 128>}, {pipeline_mode = #tpu.pipeline_mode<synchronous>, transform_indices = @transform_3, window_bounds = array<i64: 128, 128>}, {pipeline_mode = #tpu.pipeline_mode<synchronous>, transform_indices = @transform_4, window_bounds = array<i64: 1, 128>}, {pipeline_mode = #tpu.pipeline_mode<synchronous>, transform_indices = @transform_5, window_bounds = array<i64: 128, 1>}, {transform_indices = @transform_6, window_bounds = array<i64: 1, 1>}, {transform_indices = @transform_7, window_bounds = array<i64: 128, 1>}]} {
    %c0 = arith.constant 0 : index
    %c0_0 = arith.constant 0 : index
    %0 = vector.load %arg1[%c0, %c0_0] : memref<128x2xf32, #tpu.memory_space<vmem>>, vector<128x2xf32>
    %1 = vector.extract_strided_slice %0 {offsets = [0, 0], sizes = [128, 1], strides = [1, 1]} : vector<128x2xf32> to vector<128x1xf32>
    %c0_1 = arith.constant 0 : index
    %c0_2 = arith.constant 0 : index
    %2 = vector.load %arg2[%c0_1, %c0_2] : memref<2x128xf32, #tpu.memory_space<vmem>>, vector<1x128xf32>
    %3 = vector.broadcast %1 : vector<128x1xf32> to vector<128x128xf32>
    %4 = vector.broadcast %2 : vector<1x128xf32> to vector<128x128xf32>
    %5 = arith.mulf %3, %4 : vector<128x128xf32>
    %6 = vector.extract_strided_slice %0 {offsets = [0, 1], sizes = [128, 1], strides = [1, 1]} : vector<128x2xf32> to vector<128x1xf32>
    %c1 = arith.constant 1 : index
    %c0_3 = arith.constant 0 : index
    %7 = vector.load %arg2[%c1, %c0_3] : memref<2x128xf32, #tpu.memory_space<vmem>>, vector<1x128xf32>
    %8 = vector.broadcast %6 : vector<128x1xf32> to vector<128x128xf32>
    %9 = vector.broadcast %7 : vector<1x128xf32> to vector<128x128xf32>
    %10 = arith.mulf %8, %9 : vector<128x128xf32>
    %11 = arith.addf %5, %10 : vector<128x128xf32>
    %c0_4 = arith.constant 0 : index
    %c0_5 = arith.constant 0 : index
    %12 = vector.load %arg3[%c0_4, %c0_5] : memref<1x128xf32, #tpu.memory_space<vmem>>, vector<1x128xf32>
    %13 = vector.broadcast %12 : vector<1x128xf32> to vector<128x128xf32>
    %14 = arith.addf %11, %13 : vector<128x128xf32>
    %cst = arith.constant 0.000000e+00 : f32
    %15 = vector.broadcast %cst : f32 to vector<128x128xf32>
    %16 = arith.maximumf %14, %15 : vector<128x128xf32>
    %17 = arith.truncf %16 : vector<128x128xf32> to vector<128x128xbf16>
    %c0_6 = arith.constant 0 : index
    %c0_7 = arith.constant 0 : index
    %18 = vector.load %arg4[%c0_6, %c0_7] : memref<128x128xbf16, #tpu.memory_space<vmem>>, vector<128x128xbf16>
    %cst_8 = arith.constant dense<0.000000e+00> : vector<128x128xf32>
    %19 = tpu.matmul %17, %18, %cst_8 {dimension_numbers = #tpu.dot_dimension_numbers<[1], [0], [0], [1], [0, 0, 1, 1], [], []>} : vector<128x128xbf16>, vector<128x128xbf16>, vector<128x128xf32> -> vector<128x128xf32>
    %c0_9 = arith.constant 0 : index
    %c0_10 = arith.constant 0 : index
    %20 = vector.load %arg5[%c0_9, %c0_10] : memref<1x128xf32, #tpu.memory_space<vmem>>, vector<1x128xf32>
    %21 = vector.broadcast %20 : vector<1x128xf32> to vector<128x128xf32>
    %22 = arith.addf %19, %21 : vector<128x128xf32>
    %cst_11 = arith.constant 0.000000e+00 : f32
    %23 = vector.broadcast %cst_11 : f32 to vector<128x128xf32>
    %24 = arith.maximumf %22, %23 : vector<128x128xf32>
    %c0_12 = arith.constant 0 : index
    %c0_13 = arith.constant 0 : index
    %25 = vector.load %arg6[%c0_12, %c0_13] : memref<128x1xf32, #tpu.memory_space<vmem>>, vector<128x1xf32>
    %cst_14 = arith.constant dense<0.000000e+00> : vector<128x1xf32>
    %26 = tpu.matmul %24, %25, %cst_14 {dimension_numbers = #tpu.dot_dimension_numbers<[1], [0], [0], [1], [0, 0, 1, 1], [], []>} : vector<128x128xf32>, vector<128x1xf32>, vector<128x1xf32> -> vector<128x1xf32>
    %c0_15 = arith.constant 0 : index
    %c0_16 = arith.constant 0 : index
    %27 = memref.load %arg7[%c0_15, %c0_16] : memref<1x1xf32, #tpu.memory_space<smem>>
    %28 = vector.broadcast %27 : f32 to vector<128x1xf32>
    %29 = arith.addf %26, %28 : vector<128x1xf32>
    %c0_17 = arith.constant 0 : index
    %c0_18 = arith.constant 0 : index
    %30 = vector.load %arg8[%c0_17, %c0_18] : memref<128x1xf32, #tpu.memory_space<vmem>>, vector<128x1xf32>
    tpu.vector_store %arg8[%c0_17, %c0_18], %29 {strides = array<i32>} : memref<128x1xf32, #tpu.memory_space<vmem>>, vector<128x1xf32>,
    return
  }
  func.func @transform_0(%arg0: i32) -> (i32, i32) {
    %c0_i32 = arith.constant 0 : i32
    %c0_i32_0 = arith.constant 0 : i32
    return %arg0, %c0_i32 : i32, i32
  }
  func.func @transform_1(%arg0: i32) -> (i32, i32) {
    %c0_i32 = arith.constant 0 : i32
    %c0_i32_0 = arith.constant 0 : i32
    %c0_i32_1 = arith.constant 0 : i32
    return %c0_i32, %c0_i32_0 : i32, i32
  }
  func.func @transform_2(%arg0: i32) -> (i32, i32) {
    %c0_i32 = arith.constant 0 : i32
    %c0_i32_0 = arith.constant 0 : i32
    %c0_i32_1 = arith.constant 0 : i32
    return %c0_i32, %c0_i32_0 : i32, i32
  }
  func.func @transform_3(%arg0: i32) -> (i32, i32) {
    %c0_i32 = arith.constant 0 : i32
    %c0_i32_0 = arith.constant 0 : i32
    %c0_i32_1 = arith.constant 0 : i32
    return %c0_i32, %c0_i32_0 : i32, i32
  }
  func.func @transform_4(%arg0: i32) -> (i32, i32) {
    %c0_i32 = arith.constant 0 : i32
    %c0_i32_0 = arith.constant 0 : i32
    %c0_i32_1 = arith.constant 0 : i32
    return %c0_i32, %c0_i32_0 : i32, i32
  }
  func.func @transform_5(%arg0: i32) -> (i32, i32) {
    %c0_i32 = arith.constant 0 : i32
    %c0_i32_0 = arith.constant 0 : i32
    %c0_i32_1 = arith.constant 0 : i32
    return %c0_i32, %c0_i32_0 : i32, i32
  }
  func.func @transform_6(%arg0: i32) -> (i32, i32) {
    %c0_i32 = arith.constant 0 : i32
    %c0_i32_0 = arith.constant 0 : i32
    %c0_i32_1 = arith.constant 0 : i32
    return %c0_i32, %c0_i32_0 : i32, i32
  }
  func.func @transform_7(%arg0: i32) -> (i32, i32) {
    %c0_i32 = arith.constant 0 : i32
    %c0_i32_0 = arith.constant 0 : i32
    return %arg0, %c0_i32 : i32, i32
  }
}

</mosaic_0001>

<llo_original>
// kernel: tpu_custom_call.1
$region0: #{tpu_custom_call.1}
  #allocation0 [shape = 'u32[]', space=smem, size = 0x4, offset = 0x4, fixed_abs, tag = 'smem constant byte address 0x4 - core index']
  #allocation1 [shape = 'u32[144,128]{1,0:T(1,128)}', space=vmem, size = 0x12000, scoped, tag = 'internal scratch']
  #allocation2 [shape = 'f32[1,1]{1,0:T(1,128)S(6)}', space=smem, size = 0x200, scoped, tag = 'scoped memory for tpu_custom_call.1']
  %s0 = inlined_call_operand.vmem [shape: f32[256,2], index: 0, kind: input, shape index: {}]
  %s1 = inlined_call_operand.vmem [shape: f32[2,128], index: 1, kind: input, shape index: {}]
  %s2 = inlined_call_operand.vmem [shape: f32[1,128], index: 2, kind: input, shape index: {}]
  %s3 = inlined_call_operand.vmem [shape: bf16[128,128], index: 3, kind: input, shape index: {}]
  %s4 = inlined_call_operand.vmem [shape: f32[1,128], index: 4, kind: input, shape index: {}]
  %s5 = inlined_call_operand.vmem [shape: f32[128,1], index: 5, kind: input, shape index: {}]
  %s6 = inlined_call_operand.<no memory space> [shape: f32[1,1], index: 6, kind: input, shape index: {}]
  %s7 = inlined_call_operand.vmem [shape: f32[256,1], index: 7, kind: output, shape index: {}]
  %s8 = sld [smem:[#allocation0]]
  $region61: #{tpu_custom_call.1} parent=0
    _
  %s10 = ssub.s32 1, %s8
  %s11 = scalar_select 0, %s10, %s8
  %12 = sst [smem:[#allocation2]] %s6
  loop: start=0, step=1, limit=4
  $region2: #{tpu_custom_call.1} parent=0 // loop_pre_header
    _
  $region3: #{tpu_custom_call.1} parent=0 // loop_header
    %s14 = sphi 0, %s18
    %p15 = scmp.ge.s32.totalorder %s14, 4
    %s24 = sphi 0, %s26
    %s27 = sphi 0, %s24
    %s28 = sphi 0, %s27
    %s44 = sphi 0, %s28
    %s48 = sphi 0, %s48
    %s50 = sphi 0, %s48
    %s51 = sphi 0, %s50
    %s65 = sphi 0, %s51
    %s69 = sphi 0, %s69
    %s71 = sphi 0, %s69
    %s72 = sphi 0, %s71
    %s86 = sphi 0, %s72
    %s90 = sphi 0, %s90
    %s92 = sphi 0, %s90
    %s93 = sphi 0, %s92
    %s107 = sphi 0, %s93
    %s111 = sphi 0, %s111
    %s113 = sphi 0, %s111
    %s114 = sphi 0, %s113
    %s128 = sphi 0, %s114
    %s132 = sphi 0, %s132
    %s134 = sphi 0, %s132
    %s135 = sphi 0, %s134
    %s149 = sphi 0, %s135
    %s153 = sphi 0, %s153
    %s155 = sphi 0, %s153
    %s156 = sphi 0, %s155
    %s170 = sphi 0, %s156
    %s176 = sphi 0, %s178
    %s179 = sphi 0, %s176
    %s180 = sphi 0, %s179
    %s196 = sphi 0, %s180
  $region4: #{tpu_custom_call.1} parent=0 // loop_header_branch
    %17 = sbr.rel (%p15) target = $region8
  $region5: #{tpu_custom_call.1} parent=0 // loop_body
    %s19 = ssub.s32 %s14, 1
    %s20 = ssub.s32 %s14, 2
    %s21 = sadd.s32 %s14, 1
    %s22 = ssub.s32 %s14, %s21
    %p23 = scmp.eq.s32.totalorder %s22, 0
    %s25 = sadd.s32 %s24, 1
    %s26 = scalar_select %p23, %s24, %s25
    %p29 = pneg %p23
    %p30 = scmp.eq.s32.totalorder %s14, 1
    %p31 = por %p29, %p30
    %p32 = scmp.ne.s32.totalorder %s24, %s27
    %p33 = scmp.eq.s32.totalorder %s14, 0
    %p34 = por %p32, %p33
    %p35 = scmp.ne.s32.totalorder %s24, %s27
    %p36 = scmp.eq.s32.totalorder %s19, 1
    %p37 = por %p35, %p36
    %p38 = scmp.ne.s32.totalorder %s27, %s28
    %p39 = scmp.eq.s32.totalorder %s19, 0
    %p40 = por %p38, %p39
    %p41 = scmp.ne.s32.totalorder %s27, %s28
    %p42 = scmp.eq.s32.totalorder %s20, 1
    %p43 = por %p41, %p42
    %p45 = scmp.ne.s32.totalorder %s28, %s44
    %p46 = scmp.eq.s32.totalorder %s20, 0
    %p47 = por %p45, %p46
    %s49 = sadd.s32 %s48, 1
    %p52 = scmp.eq.s32.totalorder %s14, 1
    %p53 = scmp.ne.s32.totalorder %s48, %s50
    %p54 = scmp.eq.s32.totalorder %s14, 0
    %p55 = por %p53, %p54
    %p56 = scmp.ne.s32.totalorder %s48, %s50
    %p57 = scmp.eq.s32.totalorder %s19, 1
    %p58 = por %p56, %p57
    %p59 = scmp.ne.s32.totalorder %s50, %s51
    %p60 = scmp.eq.s32.totalorder %s19, 0
    %p61 = por %p59, %p60
    %p62 = scmp.ne.s32.totalorder %s50, %s51
    %p63 = scmp.eq.s32.totalorder %s20, 1
    %p64 = por %p62, %p63
    %p66 = scmp.ne.s32.totalorder %s51, %s65
    %p67 = scmp.eq.s32.totalorder %s20, 0
    %p68 = por %p66, %p67
    %s70 = sadd.s32 %s69, 1
    %p73 = scmp.eq.s32.totalorder %s14, 1
    %p74 = scmp.ne.s32.totalorder %s69, %s71
    %p75 = scmp.eq.s32.totalorder %s14, 0
    %p76 = por %p74, %p75
    %p77 = scmp.ne.s32.totalorder %s69, %s71
    %p78 = scmp.eq.s32.totalorder %s19, 1
    %p79 = por %p77, %p78
    %p80 = scmp.ne.s32.totalorder %s71, %s72
    %p81 = scmp.eq.s32.totalorder %s19, 0
    %p82 = por %p80, %p81
    %p83 = scmp.ne.s32.totalorder %s71, %s72
    %p84 = scmp.eq.s32.totalorder %s20, 1
    %p85 = por %p83, %p84
    %p87 = scmp.ne.s32.totalorder %s72, %s86
    %p88 = scmp.eq.s32.totalorder %s20, 0
    %p89 = por %p87, %p88
    %s91 = sadd.s32 %s90, 1
    %p94 = scmp.eq.s32.totalorder %s14, 1
    %p95 = scmp.ne.s32.totalorder %s90, %s92
    %p96 = scmp.eq.s32.totalorder %s14, 0
    %p97 = por %p95, %p96
    %p98 = scmp.ne.s32.totalorder %s90, %s92
    %p99 = scmp.eq.s32.totalorder %s19, 1
    %p100 = por %p98, %p99
    %p101 = scmp.ne.s32.totalorder %s92, %s93
    %p102 = scmp.eq.s32.totalorder %s19, 0
    %p103 = por %p101, %p102
    %p104 = scmp.ne.s32.totalorder %s92, %s93
    %p105 = scmp.eq.s32.totalorder %s20, 1
    %p106 = por %p104, %p105
    %p108 = scmp.ne.s32.totalorder %s93, %s107
    %p109 = scmp.eq.s32.totalorder %s20, 0
    %p110 = por %p108, %p109
    %s112 = sadd.s32 %s111, 1
    %p115 = scmp.eq.s32.totalorder %s14, 1
    %p116 = scmp.ne.s32.totalorder %s111, %s113
    %p117 = scmp.eq.s32.totalorder %s14, 0
    %p118 = por %p116, %p117
    %p119 = scmp.ne.s32.totalorder %s111, %s113
    %p120 = scmp.eq.s32.totalorder %s19, 1
    %p121 = por %p119, %p120
    %p122 = scmp.ne.s32.totalorder %s113, %s114
    %p123 = scmp.eq.s32.totalorder %s19, 0
    %p124 = por %p122, %p123
    %p125 = scmp.ne.s32.totalorder %s113, %s114
    %p126 = scmp.eq.s32.totalorder %s20, 1
    %p127 = por %p125, %p126
    %p129 = scmp.ne.s32.totalorder %s114, %s128
    %p130 = scmp.eq.s32.totalorder %s20, 0
    %p131 = por %p129, %p130
    %s133 = sadd.s32 %s132, 1
    %p136 = scmp.eq.s32.totalorder %s14, 1
    %p137 = scmp.ne.s32.totalorder %s132, %s134
    %p138 = scmp.eq.s32.totalorder %s14, 0
    %p139 = por %p137, %p138
    %p140 = scmp.ne.s32.totalorder %s132, %s134
    %p141 = scmp.eq.s32.totalorder %s19, 1
    %p142 = por %p140, %p141
    %p143 = scmp.ne.s32.totalorder %s134, %s135
    %p144 = scmp.eq.s32.totalorder %s19, 0
    %p145 = por %p143, %p144
    %p146 = scmp.ne.s32.totalorder %s134, %s135
    %p147 = scmp.eq.s32.totalorder %s20, 1
    %p148 = por %p146, %p147
    %p150 = scmp.ne.s32.totalorder %s135, %s149
    %p151 = scmp.eq.s32.totalorder %s20, 0
    %p152 = por %p150, %p151
    %s154 = sadd.s32 %s153, 1
    %p157 = scmp.eq.s32.totalorder %s14, 1
    %p158 = scmp.ne.s32.totalorder %s153, %s155
    %p159 = scmp.eq.s32.totalorder %s14, 0
    %p160 = por %p158, %p159
    %p161 = scmp.ne.s32.totalorder %s153, %s155
    %p162 = scmp.eq.s32.totalorder %s19, 1
    %p163 = por %p161, %p162
    %p164 = scmp.ne.s32.totalorder %s155, %s156
    %p165 = scmp.eq.s32.totalorder %s19, 0
    %p166 = por %p164, %p165
    %p167 = scmp.ne.s32.totalorder %s155, %s156
    %p168 = scmp.eq.s32.totalorder %s20, 1
    %p169 = por %p167, %p168
    %p171 = scmp.ne.s32.totalorder %s156, %s170
    %p172 = scmp.eq.s32.totalorder %s20, 0
    %p173 = por %p171, %p172
    %s174 = ssub.s32 %s14, %s21
    %p175 = scmp.eq.s32.totalorder %s174, 0
    %s177 = sadd.s32 %s176, 1
    %s178 = scalar_select %p175, %s176, %s177
    %p181 = pneg %p175
    %p182 = scmp.eq.s32.totalorder %s14, 1
    %p183 = por %p181, %p182
    %p184 = scmp.ne.s32.totalorder %s176, %s179
    %p185 = scmp.eq.s32.totalorder %s14, 0
    %p186 = por %p184, %p185
    %p187 = scmp.ne.s32.totalorder %s176, %s179
    %p188 = scmp.eq.s32.totalorder %s19, 1
    %p189 = por %p187, %p188
    %p190 = scmp.ne.s32.totalorder %s179, %s180
    %p191 = scmp.eq.s32.totalorder %s19, 0
    %p192 = por %p190, %p191
    %p193 = scmp.ne.s32.totalorder %s179, %s180
    %p194 = scmp.eq.s32.totalorder %s20, 1
    %p195 = por %p193, %p194
    %p197 = scmp.ne.s32.totalorder %s180, %s196
    %p198 = scmp.eq.s32.totalorder %s20, 0
    %p199 = por %p197, %p198
    %p200 = scmp.le.s32.totalorder 1, %s14
    %p201 = scmp.lt.s32.totalorder %s14, 3
    %p202 = pnand %p200, %p201
    %p203 = pneg %p202
    // Predicated region
    $region9: #{tpu_custom_call.1} parent=5 // pred_check
      _
    $region10: #{tpu_custom_call.1} parent=5 // pred_check_branch
      %205 = sbr.rel (%p202) target = $region12
    $region11: #{tpu_custom_call.1} parent=5 // pred_region
      %s206 = ssub.s32 %s14, 1
      // Predicated region
      $region13: #{tpu_custom_call.1} parent=11 // pred_check
        %p207 = pneg %p61
      $region14: #{tpu_custom_call.1} parent=11 // pred_check_branch
        %209 = sbr.rel (%p207) target = $region16
      $region15: #{tpu_custom_call.1} parent=11 // pred_region
        _
      $region16: #{tpu_custom_call.1} parent=11 // pred_fallthru
        _
      // Predicated region
      $region17: #{tpu_custom_call.1} parent=11 // pred_check
        %p210 = pneg %p82
      $region18: #{tpu_custom_call.1} parent=11 // pred_check_branch
        %212 = sbr.rel (%p210) target = $region20
      $region19: #{tpu_custom_call.1} parent=11 // pred_region
        _
      $region20: #{tpu_custom_call.1} parent=11 // pred_fallthru
        _
      // Predicated region
      $region21: #{tpu_custom_call.1} parent=11 // pred_check
        %p213 = pneg %p103
      $region22: #{tpu_custom_call.1} parent=11 // pred_check_branch
        %215 = sbr.rel (%p213) target = $region24
      $region23: #{tpu_custom_call.1} parent=11 // pred_region
        _
      $region24: #{tpu_custom_call.1} parent=11 // pred_fallthru
        _
      // Predicated region
      $region25: #{tpu_custom_call.1} parent=11 // pred_check
        %p216 = pneg %p124
      $region26: #{tpu_custom_call.1} parent=11 // pred_check_branch
        %218 = sbr.rel (%p216) target = $region28
      $region27: #{tpu_custom_call.1} parent=11 // pred_region
        _
      $region28: #{tpu_custom_call.1} parent=11 // pred_fallthru
        _
      // Predicated region
      $region29: #{tpu_custom_call.1} parent=11 // pred_check
        %p219 = pneg %p145
      $region30: #{tpu_custom_call.1} parent=11 // pred_check_branch
        %221 = sbr.rel (%p219) target = $region32
      $region31: #{tpu_custom_call.1} parent=11 // pred_region
        _
      $region32: #{tpu_custom_call.1} parent=11 // pred_fallthru
        _
      // Predicated region
      $region33: #{tpu_custom_call.1} parent=11 // pred_check
        %p222 = pneg %p166
      $region34: #{tpu_custom_call.1} parent=11 // pred_check_branch
        %224 = sbr.rel (%p222) target = $region36
      $region35: #{tpu_custom_call.1} parent=11 // pred_region
        _
      $region36: #{tpu_custom_call.1} parent=11 // pred_fallthru
        _
    $region12: #{tpu_custom_call.1} parent=5 // pred_fallthru
      _
    %p225 = scmp.lt.s32.totalorder %s14, 2
    // Predicated region
    $region37: #{tpu_custom_call.1} parent=5 // pred_check
      %p226 = pneg %p225
    $region38: #{tpu_custom_call.1} parent=5 // pred_check_branch
      %228 = sbr.rel (%p226) target = $region40
    $region39: #{tpu_custom_call.1} parent=5 // pred_region
      // Predicated region
      $region41: #{tpu_custom_call.1} parent=39 // pred_check
        %p229 = pneg %p34
      $region42: #{tpu_custom_call.1} parent=39 // pred_check_branch
        %231 = sbr.rel (%p229) target = $region44
      $region43: #{tpu_custom_call.1} parent=39 // pred_region
        %s232 = smul.u32 16, %s14
        %p233 = scmp.lt.s32.totalorder %s232, 31
        %s234 = scalar_select %p233, %s232, 31
        %s235 = smul.addr %s234, 8
        %s236 = scalar_lea.vmem %s0, %s235
        %s237 = smul.u32 16, %s14
      $region44: #{tpu_custom_call.1} parent=39 // pred_fallthru
        _
    $region40: #{tpu_custom_call.1} parent=5 // pred_fallthru
      _
    %p238 = scmp.le.s32.totalorder 1, %s14
    %p239 = scmp.lt.s32.totalorder %s14, 3
    %p240 = pnand %p238, %p239
    %p241 = pneg %p240
    // Predicated region
    $region45: #{tpu_custom_call.1} parent=5 // pred_check
      _
    $region46: #{tpu_custom_call.1} parent=5 // pred_check_branch
      %243 = sbr.rel (%p240) target = $region48
    $region47: #{tpu_custom_call.1} parent=5 // pred_region
      %s244 = ssub.s32 %s14, 1
      %s245 = smul.u32 16, %s19
      %p246 = scmp.lt.s32.totalorder %s245, 31
      %s247 = scalar_select %p246, %s245, 31
      %s248 = smul.addr %s247, 8
      %s249 = scalar_lea.vmem %s0, %s248
      %p250 = pneg %p40
      %p251 = pneg %p37
      %p252 = pneg %p61
      %p253 = pneg %p58
      %p254 = pneg %p82
      %p255 = pneg %p79
      %p256 = pneg %p103
      %p257 = pneg %p100
      %p258 = pneg %p124
      %p259 = pneg %p121
      %p260 = pneg %p145
      %p261 = pneg %p142
      %p262 = pneg %p166
      %p263 = pneg %p163
      %p264 = pneg %p192
      %p265 = pneg %p189
      %s266 = smul.u32 16, %s19
      %p267 = scmp.lt.s32.totalorder %s266, 31
      %s268 = scalar_select %p267, %s266, 31
      %s269 = smul.addr %s268, 8
      %s270 = scalar_lea.vmem %s7, %s269
      %s271 = smul.u32 16, %s19
      %p272 = scmp.lt.s32.totalorder %s271, 31
      %s273 = scalar_select %p272, %s271, 31
      %s274 = smul.addr %s273, 8
      %s275 = scalar_lea.vmem %s0, %s274
      %s276 = smul.u32 16, %s19
      %s277 = smul.u32 16, %s19
      %p278 = scmp.lt.s32.totalorder %s277, 31
      %s279 = scalar_select %p278, %s277, 31
      %s280 = smul.addr %s279, 8
      %s281 = scalar_lea.vmem %s7, %s280
      %s282 = smul.u32 16, %s19
      %v284 = vld [vmem:[%s275] sm:$0xff]
      %v285 = vld [vmem:[%s275 + $0x8] sm:$0xff]
      %v286 = vld [vmem:[%s275 + $0x10] sm:$0xff]
      %v287 = vld [vmem:[%s275 + $0x18] sm:$0xff]
      %v288 = vld [vmem:[%s275 + $0x20] sm:$0xff]
      %v289 = vld [vmem:[%s275 + $0x28] sm:$0xff]
      %v290 = vld [vmem:[%s275 + $0x30] sm:$0xff]
      %v291 = vld [vmem:[%s275 + $0x38] sm:$0xff]
      %v292 = vld [vmem:[%s275 + $0x40] sm:$0xff]
      %v293 = vld [vmem:[%s275 + $0x48] sm:$0xff]
      %v294 = vld [vmem:[%s275 + $0x50] sm:$0xff]
      %v295 = vld [vmem:[%s275 + $0x58] sm:$0xff]
      %v296 = vld [vmem:[%s275 + $0x60] sm:$0xff]
      %v297 = vld [vmem:[%s275 + $0x68] sm:$0xff]
      %v298 = vld [vmem:[%s275 + $0x70] sm:$0xff]
      %v299 = vld [vmem:[%s275 + $0x78] sm:$0xff]
      %v300 = vld [vmem:[%s1] sm:$0x1]
      %302 = vset.pattern.permute.xlu0 0
      %303 = vperm.xlu0 %302, %v284
      %v304 = vpop.permute.xlu0 %303
      %307 = vset.pattern.permute.xlu0 0
      %308 = vperm.xlu0 %307, %v285
      %v309 = vpop.permute.xlu0 %308
      %312 = vset.pattern.permute.xlu0 0
      %313 = vperm.xlu0 %312, %v286
      %v314 = vpop.permute.xlu0 %313
      %317 = vset.pattern.permute.xlu0 0
      %318 = vperm.xlu0 %317, %v287
      %v319 = vpop.permute.xlu0 %318
      %322 = vset.pattern.permute.xlu0 0
      %323 = vperm.xlu0 %322, %v288
      %v324 = vpop.permute.xlu0 %323
      %327 = vset.pattern.permute.xlu0 0
      %328 = vperm.xlu0 %327, %v289
      %v329 = vpop.permute.xlu0 %328
      %332 = vset.pattern.permute.xlu0 0
      %333 = vperm.xlu0 %332, %v290
      %v334 = vpop.permute.xlu0 %333
      %337 = vset.pattern.permute.xlu0 0
      %338 = vperm.xlu0 %337, %v291
      %v339 = vpop.permute.xlu0 %338
      %342 = vset.pattern.permute.xlu0 0
      %343 = vperm.xlu0 %342, %v292
      %v344 = vpop.permute.xlu0 %343
      %347 = vset.pattern.permute.xlu0 0
      %348 = vperm.xlu0 %347, %v293
      %v349 = vpop.permute.xlu0 %348
      %352 = vset.pattern.permute.xlu0 0
      %353 = vperm.xlu0 %352, %v294
      %v354 = vpop.permute.xlu0 %353
      %357 = vset.pattern.permute.xlu0 0
      %358 = vperm.xlu0 %357, %v295
      %v359 = vpop.permute.xlu0 %358
      %362 = vset.pattern.permute.xlu0 0
      %363 = vperm.xlu0 %362, %v296
      %v364 = vpop.permute.xlu0 %363
      %367 = vset.pattern.permute.xlu0 0
      %368 = vperm.xlu0 %367, %v297
      %v369 = vpop.permute.xlu0 %368
      %372 = vset.pattern.permute.xlu0 0
      %373 = vperm.xlu0 %372, %v298
      %v374 = vpop.permute.xlu0 %373
      %377 = vset.pattern.permute.xlu0 0
      %378 = vperm.xlu0 %377, %v299
      %v379 = vpop.permute.xlu0 %378
      %v381 = vlaneseq
      %v382 = vshrl.u32 %v381, 7
      %v383 = vsub.s32 0, %v382
      %v384 = vrot.slane %v300, %v383
      %v385 = vmul.f32 %v304, %v384
      %v386 = vmul.f32 %v309, %v384
      %v387 = vmul.f32 %v314, %v384
      %v388 = vmul.f32 %v319, %v384
      %v389 = vmul.f32 %v324, %v384
      %v390 = vmul.f32 %v329, %v384
      %v391 = vmul.f32 %v334, %v384
      %v392 = vmul.f32 %v339, %v384
      %v393 = vmul.f32 %v344, %v384
      %v394 = vmul.f32 %v349, %v384
      %v395 = vmul.f32 %v354, %v384
      %v396 = vmul.f32 %v359, %v384
      %v397 = vmul.f32 %v364, %v384
      %v398 = vmul.f32 %v369, %v384
      %v399 = vmul.f32 %v374, %v384
      %v400 = vmul.f32 %v379, %v384
      %v401 = vld [vmem:[%s1 + $0x1] sm:$0x1]
      %402 = vset.pattern.permute.xlu0 1
      %403 = vperm.xlu0 %402, %v284
      %v404 = vpop.permute.xlu0 %403
      %406 = vset.pattern.permute.xlu0 1
      %407 = vperm.xlu0 %406, %v285
      %v408 = vpop.permute.xlu0 %407
      %410 = vset.pattern.permute.xlu0 1
      %411 = vperm.xlu0 %410, %v286
      %v412 = vpop.permute.xlu0 %411
      %414 = vset.pattern.permute.xlu0 1
      %415 = vperm.xlu0 %414, %v287
      %v416 = vpop.permute.xlu0 %415
      %418 = vset.pattern.permute.xlu0 1
      %419 = vperm.xlu0 %418, %v288
      %v420 = vpop.permute.xlu0 %419
      %422 = vset.pattern.permute.xlu0 1
      %423 = vperm.xlu0 %422, %v289
      %v424 = vpop.permute.xlu0 %423
      %426 = vset.pattern.permute.xlu0 1
      %427 = vperm.xlu0 %426, %v290
      %v428 = vpop.permute.xlu0 %427
      %430 = vset.pattern.permute.xlu0 1
      %431 = vperm.xlu0 %430, %v291
      %v432 = vpop.permute.xlu0 %431
      %434 = vset.pattern.permute.xlu0 1
      %435 = vperm.xlu0 %434, %v292
      %v436 = vpop.permute.xlu0 %435
      %438 = vset.pattern.permute.xlu0 1
      %439 = vperm.xlu0 %438, %v293
      %v440 = vpop.permute.xlu0 %439
      %442 = vset.pattern.permute.xlu0 1
      %443 = vperm.xlu0 %442, %v294
      %v444 = vpop.permute.xlu0 %443
      %446 = vset.pattern.permute.xlu0 1
      %447 = vperm.xlu0 %446, %v295
      %v448 = vpop.permute.xlu0 %447
      %450 = vset.pattern.permute.xlu0 1
      %451 = vperm.xlu0 %450, %v296
      %v452 = vpop.permute.xlu0 %451
      %454 = vset.pattern.permute.xlu0 1
      %455 = vperm.xlu0 %454, %v297
      %v456 = vpop.permute.xlu0 %455
      %458 = vset.pattern.permute.xlu0 1
      %459 = vperm.xlu0 %458, %v298
      %v460 = vpop.permute.xlu0 %459
      %462 = vset.pattern.permute.xlu0 1
      %463 = vperm.xlu0 %462, %v299
      %v464 = vpop.permute.xlu0 %463
      %v466 = vlaneseq
      %v467 = vshrl.u32 %v466, 7
      %v468 = vsub.s32 0, %v467
      %v469 = vrot.slane %v401, %v468
      %v470 = vmul.f32 %v404, %v469
      %v471 = vmul.f32 %v408, %v469
      %v472 = vmul.f32 %v412, %v469
      %v473 = vmul.f32 %v416, %v469
      %v474 = vmul.f32 %v420, %v469
      %v475 = vmul.f32 %v424, %v469
      %v476 = vmul.f32 %v428, %v469
      %v477 = vmul.f32 %v432, %v469
      %v478 = vmul.f32 %v436, %v469
      %v479 = vmul.f32 %v440, %v469
      %v480 = vmul.f32 %v444, %v469
      %v481 = vmul.f32 %v448, %v469
      %v482 = vmul.f32 %v452, %v469
      %v483 = vmul.f32 %v456, %v469
      %v484 = vmul.f32 %v460, %v469
      %v485 = vmul.f32 %v464, %v469
      %v486 = vadd.f32 %v385, %v470
      %v487 = vadd.f32 %v386, %v471
      %v488 = vadd.f32 %v387, %v472
      %v489 = vadd.f32 %v388, %v473
      %v490 = vadd.f32 %v389, %v474
      %v491 = vadd.f32 %v390, %v475
      %v492 = vadd.f32 %v391, %v476
      %v493 = vadd.f32 %v392, %v477
      %v494 = vadd.f32 %v393, %v478
      %v495 = vadd.f32 %v394, %v479
      %v496 = vadd.f32 %v395, %v480
      %v497 = vadd.f32 %v396, %v481
      %v498 = vadd.f32 %v397, %v482
      %v499 = vadd.f32 %v398, %v483
      %v500 = vadd.f32 %v399, %v484
      %v501 = vadd.f32 %v400, %v485
      %v502 = vld [vmem:[%s2] sm:$0x1]
      %v504 = vlaneseq
      %v505 = vshrl.u32 %v504, 7
      %v506 = vsub.s32 0, %v505
      %v507 = vrot.slane %v502, %v506
      %v509 = vadd.f32 %v486, %v507
      %v510 = vadd.f32 %v487, %v507
      %v511 = vadd.f32 %v488, %v507
      %v512 = vadd.f32 %v489, %v507
      %v513 = vadd.f32 %v490, %v507
      %v514 = vadd.f32 %v491, %v507
      %v515 = vadd.f32 %v492, %v507
      %v516 = vadd.f32 %v493, %v507
      %v517 = vadd.f32 %v494, %v507
      %v518 = vadd.f32 %v495, %v507
      %v519 = vadd.f32 %v496, %v507
      %v520 = vadd.f32 %v497, %v507
      %v521 = vadd.f32 %v498, %v507
      %v522 = vadd.f32 %v499, %v507
      %v523 = vadd.f32 %v500, %v507
      %v524 = vadd.f32 %v501, %v507
      %v525 = vmax.f32 %v509, 0.0
      %v526 = vmax.f32 %v510, 0.0
      %v527 = vmax.f32 %v511, 0.0
      %v528 = vmax.f32 %v512, 0.0
      %v529 = vmax.f32 %v513, 0.0
      %v530 = vmax.f32 %v514, 0.0
      %v531 = vmax.f32 %v515, 0.0
      %v532 = vmax.f32 %v516, 0.0
      %v533 = vmax.f32 %v517, 0.0
      %v534 = vmax.f32 %v518, 0.0
      %v535 = vmax.f32 %v519, 0.0
      %v536 = vmax.f32 %v520, 0.0
      %v537 = vmax.f32 %v521, 0.0
      %v538 = vmax.f32 %v522, 0.0
      %v539 = vmax.f32 %v523, 0.0
      %v540 = vmax.f32 %v524, 0.0
      %v541 = vpack.c.bf16 %v526, %v525
      %v542 = vpack.c.bf16 %v528, %v527
      %v543 = vpack.c.bf16 %v530, %v529
      %v544 = vpack.c.bf16 %v532, %v531
      %v545 = vpack.c.bf16 %v534, %v533
      %v546 = vpack.c.bf16 %v536, %v535
      %v547 = vpack.c.bf16 %v538, %v537
      %v548 = vpack.c.bf16 %v540, %v539
      %v549 = vld [vmem:[%s3] sm:$0xf]
      %v550 = vld [vmem:[%s3 + $0x4] sm:$0xf]
      %v551 = vld [vmem:[%s3 + $0x8] sm:$0xf]
      %v552 = vld [vmem:[%s3 + $0xc] sm:$0xf]
      %v553 = vld [vmem:[%s3 + $0x10] sm:$0xf]
      %v554 = vld [vmem:[%s3 + $0x14] sm:$0xf]
      %v555 = vld [vmem:[%s3 + $0x18] sm:$0xf]
      %v556 = vld [vmem:[%s3 + $0x1c] sm:$0xf]
      %v557 = vld [vmem:[%s3 + $0x20] sm:$0xf]
      %v558 = vld [vmem:[%s3 + $0x24] sm:$0xf]
      %v559 = vld [vmem:[%s3 + $0x28] sm:$0xf]
      %v560 = vld [vmem:[%s3 + $0x2c] sm:$0xf]
      %v561 = vld [vmem:[%s3 + $0x30] sm:$0xf]
      %v562 = vld [vmem:[%s3 + $0x34] sm:$0xf]
      %v563 = vld [vmem:[%s3 + $0x38] sm:$0xf]
      %v564 = vld [vmem:[%s3 + $0x3c] sm:$0xf]
      %v565 = vld [vmem:[%s4] sm:$0x1]
      %v567 = vlaneseq
      %v568 = vshrl.u32 %v567, 7
      %v569 = vsub.s32 0, %v568
      %v570 = vrot.slane %v565, %v569
      %v588 = vunpack.c.l.b16 %v549
      %v589 = vunpack.c.l.b16 %v550
      %v590 = vunpack.c.l.b16 %v551
      %v591 = vunpack.c.l.b16 %v552
      %v592 = vunpack.c.l.b16 %v553
      %v593 = vunpack.c.l.b16 %v554
      %v594 = vunpack.c.l.b16 %v555
      %v595 = vunpack.c.l.b16 %v556
      %v596 = vunpack.c.l.b16 %v557
      %v597 = vunpack.c.l.b16 %v558
      %v598 = vunpack.c.l.b16 %v559
      %v599 = vunpack.c.l.b16 %v560
      %v600 = vunpack.c.l.b16 %v561
      %v601 = vunpack.c.l.b16 %v562
      %v602 = vunpack.c.l.b16 %v563
      %v603 = vunpack.c.l.b16 %v564
      %v604 = vpack.c.b16 %v589, %v588
      %v605 = vpack.c.b16 %v591, %v590
      %v606 = vpack.c.b16 %v593, %v592
      %v607 = vpack.c.b16 %v595, %v594
      %v608 = vpack.c.b16 %v597, %v596
      %v609 = vpack.c.b16 %v599, %v598
      %v610 = vpack.c.b16 %v601, %v600
      %v611 = vpack.c.b16 %v603, %v602
      %620 = vmatprep.subr.bf16.mxu0 0
      %621 = vmatpush1.bf16.msra.mxu0 %v611
      %622 = vmatprep.subr.bf16.mxu0 0
      %623 = vmatpush1.bf16.msra.mxu0 %v610
      %624 = vmatprep.subr.bf16.mxu0 0
      %625 = vmatpush1.bf16.msra.mxu0 %v609
      %626 = vmatprep.subr.bf16.mxu0 0
      %627 = vmatpush1.bf16.msra.mxu0 %v608
      %628 = vmatprep.subr.bf16.mxu0 0
      %629 = vmatpush1.bf16.msra.mxu0 %v607
      %630 = vmatprep.subr.bf16.mxu0 0
      %631 = vmatpush1.bf16.msra.mxu0 %v606
      %632 = vmatprep.subr.bf16.mxu0 0
      %633 = vmatpush1.bf16.msra.mxu0 %v605
      %634 = vmatprep.subr.bf16.mxu0 0
      %635 = vmatpush1.bf16.msra.mxu0 %v604
      %636 = vmatprep.subr.bf16.mxu0 0
      %637 = vmatpush2.bf16.msra.mxu0 0
      %638 = vmatprep.subr.bf16.mxu0 0
      %639 = vmatpush2.bf16.msra.mxu0 0
      %640 = vmatprep.subr.bf16.mxu0 0
      %641 = vmatpush2.bf16.msra.mxu0 0
      %642 = vmatprep.subr.bf16.mxu0 0
      %643 = vmatpush2.bf16.msra.mxu0 0
      %644 = vmatprep.subr.bf16.mxu0 0
      %645 = vmatpush2.bf16.msra.mxu0 0
      %646 = vmatprep.subr.bf16.mxu0 0
      %647 = vmatpush2.bf16.msra.mxu0 0
      %648 = vmatprep.subr.bf16.mxu0 0
      %649 = vmatpush2.bf16.msra.mxu0 0
      %650 = vmatprep.subr.bf16.mxu0 0
      %651 = vmatpush2.bf16.msra.mxu0 0
      %652 = vmatprep.mubr.bf16.mxu0 0
      %653 = vmatmul.mubr.bf16.gmra.mxu0 %v541
      %v654 = vpop.f32.mrf.mxu0
      %v655 = vadd.f32 %v570, %v654
      %v656 = vpop.f32.mrf.mxu0
      %v657 = vpop.f32.mrf.mxu0
      %v658 = vadd.f32 %v570, %v657
      %v659 = vpop.f32.mrf.mxu0
      %660 = vmatprep.mubr.bf16.mxu0 0
      %661 = vmatmul.mubr.bf16.gmra.mxu0 %v542
      %v662 = vpop.f32.mrf.mxu0
      %v663 = vadd.f32 %v570, %v662
      %v664 = vpop.f32.mrf.mxu0
      %v665 = vpop.f32.mrf.mxu0
      %v666 = vadd.f32 %v570, %v665
      %v667 = vpop.f32.mrf.mxu0
      %668 = vmatprep.mubr.bf16.mxu0 0
      %669 = vmatmul.mubr.bf16.gmra.mxu0 %v543
      %v670 = vpop.f32.mrf.mxu0
      %v671 = vadd.f32 %v570, %v670
      %v672 = vpop.f32.mrf.mxu0
      %v673 = vpop.f32.mrf.mxu0
      %v674 = vadd.f32 %v570, %v673
      %v675 = vpop.f32.mrf.mxu0
      %676 = vmatprep.mubr.bf16.mxu0 0
      %677 = vmatmul.mubr.bf16.gmra.mxu0 %v544
      %v678 = vpop.f32.mrf.mxu0
      %v679 = vadd.f32 %v570, %v678
      %v680 = vpop.f32.mrf.mxu0
      %v681 = vpop.f32.mrf.mxu0
      %v682 = vadd.f32 %v570, %v681
      %v683 = vpop.f32.mrf.mxu0
      %684 = vmatprep.mubr.bf16.mxu0 0
      %685 = vmatmul.mubr.bf16.gmra.mxu0 %v545
      %v686 = vpop.f32.mrf.mxu0
      %v687 = vadd.f32 %v570, %v686
      %v688 = vpop.f32.mrf.mxu0
      %v689 = vpop.f32.mrf.mxu0
      %v690 = vadd.f32 %v570, %v689
      %v691 = vpop.f32.mrf.mxu0
      %692 = vmatprep.mubr.bf16.mxu0 0
      %693 = vmatmul.mubr.bf16.gmra.mxu0 %v546
      %v694 = vpop.f32.mrf.mxu0
      %v695 = vadd.f32 %v570, %v694
      %v696 = vpop.f32.mrf.mxu0
      %v697 = vpop.f32.mrf.mxu0
      %v698 = vadd.f32 %v570, %v697
      %v699 = vpop.f32.mrf.mxu0
      %700 = vmatprep.mubr.bf16.mxu0 0
      %701 = vmatmul.mubr.bf16.gmra.mxu0 %v547
      %v702 = vpop.f32.mrf.mxu0
      %v703 = vadd.f32 %v570, %v702
      %v704 = vpop.f32.mrf.mxu0
      %v705 = vpop.f32.mrf.mxu0
      %v706 = vadd.f32 %v570, %v705
      %v707 = vpop.f32.mrf.mxu0
      %708 = vmatprep.mubr.bf16.mxu0 0
      %709 = vmatmul.mubr.bf16.gmra.mxu0 %v548
      %v710 = vpop.f32.mrf.mxu0
      %v711 = vadd.f32 %v570, %v710
      %v712 = vpop.f32.mrf.mxu0
      %v713 = vpop.f32.mrf.mxu0
      %v714 = vadd.f32 %v570, %v713
      %v715 = vpop.f32.mrf.mxu0
      %716 = vdwg.mxu0
      %v717 = vmax.f32 %v655, 0.0
      %v718 = vmax.f32 %v658, 0.0
      %v719 = vmax.f32 %v663, 0.0
      %v720 = vmax.f32 %v666, 0.0
      %v721 = vmax.f32 %v671, 0.0
      %v722 = vmax.f32 %v674, 0.0
      %v723 = vmax.f32 %v679, 0.0
      %v724 = vmax.f32 %v682, 0.0
      %v725 = vmax.f32 %v687, 0.0
      %v726 = vmax.f32 %v690, 0.0
      %v727 = vmax.f32 %v695, 0.0
      %v728 = vmax.f32 %v698, 0.0
      %v729 = vmax.f32 %v703, 0.0
      %v730 = vmax.f32 %v706, 0.0
      %v731 = vmax.f32 %v711, 0.0
      %v732 = vmax.f32 %v714, 0.0
      %v733 = vld [vmem:[%s5] sm:$0xff]
      %v734 = vld [vmem:[%s5 + $0x8] sm:$0xff]
      %v735 = vld [vmem:[%s5 + $0x10] sm:$0xff]
      %v736 = vld [vmem:[%s5 + $0x18] sm:$0xff]
      %v737 = vld [vmem:[%s5 + $0x20] sm:$0xff]
      %v738 = vld [vmem:[%s5 + $0x28] sm:$0xff]
      %v739 = vld [vmem:[%s5 + $0x30] sm:$0xff]
      %v740 = vld [vmem:[%s5 + $0x38] sm:$0xff]
      %v741 = vld [vmem:[%s5 + $0x40] sm:$0xff]
      %v742 = vld [vmem:[%s5 + $0x48] sm:$0xff]
      %v743 = vld [vmem:[%s5 + $0x50] sm:$0xff]
      %v744 = vld [vmem:[%s5 + $0x58] sm:$0xff]
      %v745 = vld [vmem:[%s5 + $0x60] sm:$0xff]
      %v746 = vld [vmem:[%s5 + $0x68] sm:$0xff]
      %v747 = vld [vmem:[%s5 + $0x70] sm:$0xff]
      %v748 = vld [vmem:[%s5 + $0x78] sm:$0xff]
      %s749 = sld [smem:[#allocation2]]
      %v750 = vstv %s749
      %751 = vmatprep.subr.mxu0 0.0
      %752 = vmatpush1.msra.mxu0 %v748
      %753 = vmatprep.subr.mxu0 0.0
      %754 = vmatpush1.msra.mxu0 %v747
      %755 = vmatprep.subr.mxu0 0.0
      %756 = vmatpush1.msra.mxu0 %v746
      %757 = vmatprep.subr.mxu0 0.0
      %758 = vmatpush1.msra.mxu0 %v745
      %759 = vmatprep.subr.mxu0 0.0
      %760 = vmatpush1.msra.mxu0 %v744
      %761 = vmatprep.subr.mxu0 0.0
      %762 = vmatpush1.msra.mxu0 %v743
      %763 = vmatprep.subr.mxu0 0.0
      %764 = vmatpush1.msra.mxu0 %v742
      %765 = vmatprep.subr.mxu0 0.0
      %766 = vmatpush1.msra.mxu0 %v741
      %767 = vmatprep.subr.mxu0 0.0
      %768 = vmatpush1.msra.mxu0 %v740
      %769 = vmatprep.subr.mxu0 0.0
      %770 = vmatpush1.msra.mxu0 %v739
      %771 = vmatprep.subr.mxu0 0.0
      %772 = vmatpush1.msra.mxu0 %v738
      %773 = vmatprep.subr.mxu0 0.0
      %774 = vmatpush1.msra.mxu0 %v737
      %775 = vmatprep.subr.mxu0 0.0
      %776 = vmatpush1.msra.mxu0 %v736
      %777 = vmatprep.subr.mxu0 0.0
      %778 = vmatpush1.msra.mxu0 %v735
      %779 = vmatprep.subr.mxu0 0.0
      %780 = vmatpush1.msra.mxu0 %v734
      %781 = vmatprep.subr.mxu0 0.0
      %782 = vmatpush1.msra.mxu0 %v733
      %783 = vmatprep.subr.mxu0 0.0
      %784 = vmatpush2.msra.mxu0 0.0
      %785 = vmatprep.subr.mxu0 0.0
      %786 = vmatpush2.msra.mxu0 0.0
      %787 = vmatprep.subr.mxu0 0.0
      %788 = vmatpush2.msra.mxu0 0.0
      %789 = vmatprep.subr.mxu0 0.0
      %790 = vmatpush2.msra.mxu0 0.0
      %791 = vmatprep.subr.mxu0 0.0
      %792 = vmatpush2.msra.mxu0 0.0
      %793 = vmatprep.subr.mxu0 0.0
      %794 = vmatpush2.msra.mxu0 0.0
      %795 = vmatprep.subr.mxu0 0.0
      %796 = vmatpush2.msra.mxu0 0.0
      %797 = vmatprep.subr.mxu0 0.0
      %798 = vmatpush2.msra.mxu0 0.0
      %799 = vmatprep.subr.mxu0 0.0
      %800 = vmatpush2.msra.mxu0 0.0
      %801 = vmatprep.subr.mxu0 0.0
      %802 = vmatpush2.msra.mxu0 0.0
      %803 = vmatprep.subr.mxu0 0.0
      %804 = vmatpush2.msra.mxu0 0.0
      %805 = vmatprep.subr.mxu0 0.0
      %806 = vmatpush2.msra.mxu0 0.0
      %807 = vmatprep.subr.mxu0 0.0
      %808 = vmatpush2.msra.mxu0 0.0
      %809 = vmatprep.subr.mxu0 0.0
      %810 = vmatpush2.msra.mxu0 0.0
      %811 = vmatprep.subr.mxu0 0.0
      %812 = vmatpush2.msra.mxu0 0.0
      %813 = vmatprep.subr.mxu0 0.0
      %814 = vmatpush2.msra.mxu0 0.0
      %815 = vmatprep.mubr.f32.mxu0 0.0
      %816 = vmatmul.mubr.f32.gmra.mxu0 %v717
      %v817 = vpop.f32.mrf.mxu0
      %v818 = vadd.f32 %v750, %v817
      %v819 = vpop.f32.mrf.mxu0
      %820 = vmatprep.mubr.f32.mxu0 0.0
      %821 = vmatmul.mubr.f32.gmra.mxu0 %v718
      %v822 = vpop.f32.mrf.mxu0
      %v823 = vadd.f32 %v750, %v822
      %v824 = vpop.f32.mrf.mxu0
      %825 = vmatprep.mubr.f32.mxu0 0.0
      %826 = vmatmul.mubr.f32.gmra.mxu0 %v719
      %v827 = vpop.f32.mrf.mxu0
      %v828 = vadd.f32 %v750, %v827
      %v829 = vpop.f32.mrf.mxu0
      %830 = vmatprep.mubr.f32.mxu0 0.0
      %831 = vmatmul.mubr.f32.gmra.mxu0 %v720
      %v832 = vpop.f32.mrf.mxu0
      %v833 = vadd.f32 %v750, %v832
      %v834 = vpop.f32.mrf.mxu0
      %835 = vmatprep.mubr.f32.mxu0 0.0
      %836 = vmatmul.mubr.f32.gmra.mxu0 %v721
      %v837 = vpop.f32.mrf.mxu0
      %v838 = vadd.f32 %v750, %v837
      %v839 = vpop.f32.mrf.mxu0
      %840 = vmatprep.mubr.f32.mxu0 0.0
      %841 = vmatmul.mubr.f32.gmra.mxu0 %v722
      %v842 = vpop.f32.mrf.mxu0
      %v843 = vadd.f32 %v750, %v842
      %v844 = vpop.f32.mrf.mxu0
      %845 = vmatprep.mubr.f32.mxu0 0.0
      %846 = vmatmul.mubr.f32.gmra.mxu0 %v723
      %v847 = vpop.f32.mrf.mxu0
      %v848 = vadd.f32 %v750, %v847
      %v849 = vpop.f32.mrf.mxu0
      %850 = vmatprep.mubr.f32.mxu0 0.0
      %851 = vmatmul.mubr.f32.gmra.mxu0 %v724
      %v852 = vpop.f32.mrf.mxu0
      %v853 = vadd.f32 %v750, %v852
      %v854 = vpop.f32.mrf.mxu0
      %855 = vmatprep.mubr.f32.mxu0 0.0
      %856 = vmatmul.mubr.f32.gmra.mxu0 %v725
      %v857 = vpop.f32.mrf.mxu0
      %v858 = vadd.f32 %v750, %v857
      %v859 = vpop.f32.mrf.mxu0
      %860 = vmatprep.mubr.f32.mxu0 0.0
      %861 = vmatmul.mubr.f32.gmra.mxu0 %v726
      %v862 = vpop.f32.mrf.mxu0
      %v863 = vadd.f32 %v750, %v862
      %v864 = vpop.f32.mrf.mxu0
      %865 = vmatprep.mubr.f32.mxu0 0.0
      %866 = vmatmul.mubr.f32.gmra.mxu0 %v727
      %v867 = vpop.f32.mrf.mxu0
      %v868 = vadd.f32 %v750, %v867
      %v869 = vpop.f32.mrf.mxu0
      %870 = vmatprep.mubr.f32.mxu0 0.0
      %871 = vmatmul.mubr.f32.gmra.mxu0 %v728
      %v872 = vpop.f32.mrf.mxu0
      %v873 = vadd.f32 %v750, %v872
      %v874 = vpop.f32.mrf.mxu0
      %875 = vmatprep.mubr.f32.mxu0 0.0
      %876 = vmatmul.mubr.f32.gmra.mxu0 %v729
      %v877 = vpop.f32.mrf.mxu0
      %v878 = vadd.f32 %v750, %v877
      %v879 = vpop.f32.mrf.mxu0
      %880 = vmatprep.mubr.f32.mxu0 0.0
      %881 = vmatmul.mubr.f32.gmra.mxu0 %v730
      %v882 = vpop.f32.mrf.mxu0
      %v883 = vadd.f32 %v750, %v882
      %v884 = vpop.f32.mrf.mxu0
      %885 = vmatprep.mubr.f32.mxu0 0.0
      %886 = vmatmul.mubr.f32.gmra.mxu0 %v731
      %v887 = vpop.f32.mrf.mxu0
      %v888 = vadd.f32 %v750, %v887
      %v889 = vpop.f32.mrf.mxu0
      %890 = vmatprep.mubr.f32.mxu0 0.0
      %891 = vmatmul.mubr.f32.gmra.mxu0 %v732
      %v892 = vpop.f32.mrf.mxu0
      %v893 = vadd.f32 %v750, %v892
      %v894 = vpop.f32.mrf.mxu0
      %895 = vdwg.mxu0
      %vm896 = vcmask 7168
      %897 = vst.msk [vmem:[%s281] sm:$0xff] %vm896, %v818
      %898 = vst.msk [vmem:[%s281 + $0x8] sm:$0xff] %vm896, %v823
      %899 = vst.msk [vmem:[%s281 + $0x10] sm:$0xff] %vm896, %v828
      %900 = vst.msk [vmem:[%s281 + $0x18] sm:$0xff] %vm896, %v833
      %901 = vst.msk [vmem:[%s281 + $0x20] sm:$0xff] %vm896, %v838
      %902 = vst.msk [vmem:[%s281 + $0x28] sm:$0xff] %vm896, %v843
      %903 = vst.msk [vmem:[%s281 + $0x30] sm:$0xff] %vm896, %v848
      %904 = vst.msk [vmem:[%s281 + $0x38] sm:$0xff] %vm896, %v853
      %905 = vst.msk [vmem:[%s281 + $0x40] sm:$0xff] %vm896, %v858
      %906 = vst.msk [vmem:[%s281 + $0x48] sm:$0xff] %vm896, %v863
      %907 = vst.msk [vmem:[%s281 + $0x50] sm:$0xff] %vm896, %v868
      %908 = vst.msk [vmem:[%s281 + $0x58] sm:$0xff] %vm896, %v873
      %909 = vst.msk [vmem:[%s281 + $0x60] sm:$0xff] %vm896, %v878
      %910 = vst.msk [vmem:[%s281 + $0x68] sm:$0xff] %vm896, %v883
      %911 = vst.msk [vmem:[%s281 + $0x70] sm:$0xff] %vm896, %v888
      %912 = vst.msk [vmem:[%s281 + $0x78] sm:$0xff] %vm896, %v893
      %s913 = smul.u32 16, %s19
      %p914 = scmp.lt.s32.totalorder %s913, 31
      %s915 = scalar_select %p914, %s913, 31
      %s916 = smul.addr %s915, 8
      %s917 = scalar_lea.vmem %s7, %s916
      // Predicated region
      $region49: #{tpu_custom_call.1} parent=47 // pred_check
        %p918 = pneg %p189
      $region50: #{tpu_custom_call.1} parent=47 // pred_check_branch
        %920 = sbr.rel (%p918) target = $region52
      $region51: #{tpu_custom_call.1} parent=47 // pred_region
        %s921 = smul.u32 16, %s19
      $region52: #{tpu_custom_call.1} parent=47 // pred_fallthru
        _
    $region48: #{tpu_custom_call.1} parent=5 // pred_fallthru
      _
    %p922 = scmp.le.s32.totalorder 2, %s14
    // Predicated region
    $region53: #{tpu_custom_call.1} parent=5 // pred_check
      %p923 = pneg %p922
    $region54: #{tpu_custom_call.1} parent=5 // pred_check_branch
      %925 = sbr.rel (%p923) target = $region56
    $region55: #{tpu_custom_call.1} parent=5 // pred_region
      %s926 = ssub.s32 %s14, 2
      // Predicated region
      $region57: #{tpu_custom_call.1} parent=55 // pred_check
        %p927 = pneg %p195
      $region58: #{tpu_custom_call.1} parent=55 // pred_check_branch
        %929 = sbr.rel (%p927) target = $region60
      $region59: #{tpu_custom_call.1} parent=55 // pred_region
        %s930 = smul.u32 16, %s20
        %p931 = scmp.lt.s32.totalorder %s930, 31
        %s932 = scalar_select %p931, %s930, 31
        %s933 = smul.addr %s932, 8
        %s934 = scalar_lea.vmem %s7, %s933
      $region60: #{tpu_custom_call.1} parent=55 // pred_fallthru
        _
    $region56: #{tpu_custom_call.1} parent=5 // pred_fallthru
      _
  $region6: #{tpu_custom_call.1} parent=0 // loop_footer
    %s18 = sadd.s32 1, %s14
  $region7: #{tpu_custom_call.1} parent=0 // loop_footer_branch
    %13 = sbr.rel target = $region3
  $region8: #{tpu_custom_call.1} parent=0 // loop_exit
    _

</llo_original>
